<compile_context>
chip_gen: v6e
topology: v6e:2x2x1
jax: 0.10.0
libtpu: 0.0.40
codegen_flags: <defaults>
</compile_context>

<pallas_src>
import jax
import jax.numpy as jnp
from jax import lax
from jax.experimental import pallas as pl
from jax.experimental.pallas import tpu as pltpu


def _round_up(x, m):
    return (x + m - 1) // m * m


# dtype itemsize -> sublane tile (f32:8, bf16:16, int8/fp8:32)
_SUBLANE = {4: 8, 2: 16, 1: 32}


def _choose_tiling(n, d, itemsize, max_inflight, out_vmem_budget):
    """Pick (chunk rows per grid step, DMA ring depth, padded id count)."""
    sub = _SUBLANE.get(itemsize, 8)
    # Budget covers the double-buffered (chunk, d) output block.
    cap = max(sub, (out_vmem_budget // max(1, 2 * d * itemsize)) // sub * sub)
    cap = min(cap, 1024)
    # Prefer >= 2 grid steps so both v7x TensorCores get grid steps.
    target = _round_up(max(1, (n + 1) // 2), sub)
    chunk = max(sub, min(cap, target, _round_up(n, sub)))
    nbuf = max(1, min(max_inflight, chunk))
    chunk = _round_up(chunk, nbuf)  # DMA ring divides the chunk evenly
    n_pad = _round_up(n, chunk)
    return chunk, nbuf, n_pad


def _make_vmem_gather_kernel(chunk, num_rows, unroll):
    """Fast path: table resident in VMEM, direct dynamic-row reads."""

    def kernel(ids_ref, table_ref, out_ref):
        # ids_ref:   (n_pad,)  int32 in SMEM (scalar prefetch)
        # table_ref: (V, D)    VMEM-resident table
        # out_ref:   (chunk,D) pipelined VMEM output block
        base = pl.program_id(0) * chunk

        def body(r, carry):
            row = jnp.clip(ids_ref[base + r], 0, num_rows - 1)
            out_ref[pl.ds(r, 1), :] = table_ref[pl.ds(row, 1), :]
            return carry

        lax.fori_loop(0, chunk, body, 0, unroll=unroll)

    return kernel


def _make_hbm_gather_kernel(chunk, nbuf, num_rows):
    """Large-table path: table stays in HBM, row DMAs land directly in out_ref."""
    assert chunk % nbuf == 0
    ngroups = chunk // nbuf

    def kernel(ids_ref, table_hbm, out_ref, sems):
        # ids_ref:   (n_pad,)  int32 in SMEM (scalar prefetch)
        # table_hbm: (V, D)    raw HBM ref (memory_space=pl.ANY)
        # out_ref:   (chunk,D) pipelined VMEM output block (DMA destination)
        # sems:      (nbuf,)   DMA semaphore ring
        base = pl.program_id(0) * chunk

        def row_copy(r, slot):
            # Identical descriptor is built for .start() and its matching .wait().
            row = jnp.clip(ids_ref[base + r], 0, num_rows - 1)
            return pltpu.make_async_copy(
                table_hbm.at[pl.ds(row, 1)],
                out_ref.at[pl.ds(r, 1)],
                sems.at[slot],
            )

        # Prime the ring: nbuf row DMAs in flight, landing directly in out_ref.
        for j in range(nbuf):
            row_copy(j, j).start()

        def group(g, carry):
            cur = g * nbuf
            prev = cur - nbuf
            # Hoist ALL SMEM id reads / clips above the DMA waits (waits break
            # SMEM sst->sld forwarding); only the descriptor pushes stay below.
            done = [row_copy(prev + j, j) for j in range(nbuf)]
            nxt = [row_copy(cur + j, j) for j in range(nbuf)]
            for j in range(nbuf):
                done[j].wait()      # retire slot j of previous group
                nxt[j].start()      # immediately refill slot j
            return carry

        lax.fori_loop(1, ngroups, group, 0)

        # Epilogue: retire the final group so every DMA has landed before the
        # pipeline writes out_ref back to HBM.
        last = (ngroups - 1) * nbuf
        tail = [row_copy(last + j, j) for j in range(nbuf)]
        for c in tail:
            c.wait()

    return kernel


def event_embedding_forward(event_inputs, embedding_table, *,
                            max_inflight=16,
                            fast_path_table_bytes=4 * 1024 * 1024,
                            out_vmem_budget=8 * 1024 * 1024,
                            force_hbm_gather=False):
    """event_inputs: (...,) int indices; embedding_table: (V, D) -> (..., D)."""
    orig_shape = event_inputs.shape
    V, D = embedding_table.shape
    dtype = embedding_table.dtype
    itemsize = int(jnp.dtype(dtype).itemsize)

    ids = event_inputs.reshape(-1).astype(jnp.int32)
    n = int(ids.shape[0])

    chunk, nbuf, n_pad = _choose_tiling(n, D, itemsize, max_inflight, out_vmem_budget)
    if n_pad != n:
        ids = jnp.pad(ids, (0, n_pad - n))  # padded ids gather row 0 (discarded)
    grid = (n_pad // chunk,)

    table_bytes = V * D * itemsize
    use_fast = (not force_hbm_gather) and table_bytes <= fast_path_table_bytes

    cost = pl.CostEstimate(
        flops=0,
        transcendentals=0,
        bytes_accessed=2 * n_pad * D * itemsize + 4 * n_pad + table_bytes,
    )

    if use_fast:
        kernel = _make_vmem_gather_kernel(chunk, V, unroll=min(8, chunk))
        grid_spec = pltpu.PrefetchScalarGridSpec(
            num_scalar_prefetch=1,                               # ids -> SMEM
            grid=grid,
            in_specs=[pl.BlockSpec(memory_space=pltpu.MemorySpace.VMEM)],  # table resident
            out_specs=pl.BlockSpec((chunk, D), lambda i, ids_ref: (i, 0)),
        )
    else:
        kernel = _make_hbm_gather_kernel(chunk, nbuf, V)
        grid_spec = pltpu.PrefetchScalarGridSpec(
            num_scalar_prefetch=1,                               # ids -> SMEM
            grid=grid,
            in_specs=[pl.BlockSpec(memory_space=pl.ANY)],        # table stays in HBM
            out_specs=pl.BlockSpec((chunk, D), lambda i, ids_ref: (i, 0)),
            scratch_shapes=[pltpu.SemaphoreType.DMA((nbuf,))],
        )

    out_padded = pl.pallas_call(
        kernel,
        out_shape=jax.ShapeDtypeStruct((n_pad, D), dtype),
        grid_spec=grid_spec,
        compiler_params=pltpu.CompilerParams(
            dimension_semantics=("parallel",),  # shard row-chunks across TCs (v7x)
        ),
        cost_estimate=cost,
    )(ids, embedding_table)

    out = out_padded[:n] if n_pad != n else out_padded
    return out.reshape(*orig_shape, D)


if __name__ == "__main__":
    # Shapes consistent with the module's forward pass.
    num_events = 16
    embedding_dim = 32
    batch = 2
    seq = 8

    key = jax.random.PRNGKey(0)
    k_table, k_ids, k_ids2 = jax.random.split(key, 3)

    # nn.Embedding weight ~ N(0, 1) by default.
    embedding_table = jax.random.normal(
        k_table, (num_events, embedding_dim), dtype=jnp.float32
    )
    event_inputs = jax.random.randint(
        k_ids, (batch, seq), minval=0, maxval=num_events, dtype=jnp.int32
    )

    # 1) Default dispatch (small table -> VMEM-resident fast path).
    out = event_embedding_forward(event_inputs, embedding_table)
    out = jax.block_until_ready(out)
    ref = embedding_table[event_inputs]
    assert out.shape == (batch, seq, embedding_dim)
    assert jnp.array_equal(out, ref), "fast-path mismatch vs reference gather"

    # 2) Exercise the large-vocabulary HBM DMA-gather path as well (forced).
    V2, D2 = 512, 256
    table2 = jax.random.normal(k_table, (V2, D2), dtype=jnp.float32)
    ids2 = jax.random.randint(k_ids2, (5, 8), minval=0, maxval=V2, dtype=jnp.int32)
    out2 = event_embedding_forward(ids2, table2, force_hbm_gather=True)
    out2 = jax.block_until_ready(out2)
    assert out2.shape == (5, 8, D2)
    assert jnp.array_equal(out2, table2[ids2]), "HBM-path mismatch vs reference gather"

    print("KERNEL_OK")
</pallas_src>

<mosaic_0001>
module attributes {stable_mosaic.version = 11 : i64} {
  func.func @kernel(%arg0: i32, %arg1: memref<16xi32, #tpu.memory_space<smem>>, %arg2: memref<16x32xf32, #tpu.memory_space<vmem>>, %arg3: memref<8x32xf32, #tpu.memory_space<vmem>>) attributes {dimension_semantics = [#tpu.dimension_semantics<parallel>], iteration_bounds = array<i64: 2>, scalar_prefetch = 1 : i64, scratch_operands = 0 : i64, tpu.core_type = #tpu.core_type<tc>, window_params = [{pipeline_mode = #tpu.pipeline_mode<synchronous>, transform_indices = @transform_0, window_bounds = array<i64: 16, 32>}, {transform_indices = @transform_1, window_bounds = array<i64: 8, 32>}]} {
    %c8_i32 = arith.constant 8 : i32
    %0 = arith.muli %arg0, %c8_i32 : i32
    %c0_i32 = arith.constant 0 : i32
    %1 = arith.addi %0, %c0_i32 : i32
    %2 = arith.index_cast %1 : i32 to index
    %3 = memref.load %arg1[%2] : memref<16xi32, #tpu.memory_space<smem>>
    %c0_i32_0 = arith.constant 0 : i32
    %c15_i32 = arith.constant 15 : i32
    %4 = arith.maxsi %c0_i32_0, %3 : i32
    %5 = arith.minsi %c15_i32, %4 : i32
    %6 = arith.index_cast %5 : i32 to index
    %c0 = arith.constant 0 : index
    %7 = vector.load %arg2[%6, %c0] : memref<16x32xf32, #tpu.memory_space<vmem>>, vector<1x32xf32>
    %8 = arith.index_cast %c0_i32 : i32 to index
    %c0_1 = arith.constant 0 : index
    %9 = vector.load %arg3[%8, %c0_1] : memref<8x32xf32, #tpu.memory_space<vmem>>, vector<1x32xf32>
    tpu.vector_store %arg3[%8, %c0_1], %7 {strides = array<i32>} : memref<8x32xf32, #tpu.memory_space<vmem>>, vector<1x32xf32>,
    %c1_i32 = arith.constant 1 : i32
    %10 = arith.addi %0, %c1_i32 : i32
    %11 = arith.index_cast %10 : i32 to index
    %12 = memref.load %arg1[%11] : memref<16xi32, #tpu.memory_space<smem>>
    %c0_i32_2 = arith.constant 0 : i32
    %c15_i32_3 = arith.constant 15 : i32
    %13 = arith.maxsi %c0_i32_2, %12 : i32
    %14 = arith.minsi %c15_i32_3, %13 : i32
    %15 = arith.index_cast %14 : i32 to index
    %c0_4 = arith.constant 0 : index
    %16 = vector.load %arg2[%15, %c0_4] : memref<16x32xf32, #tpu.memory_space<vmem>>, vector<1x32xf32>
    %17 = arith.index_cast %c1_i32 : i32 to index
    %c0_5 = arith.constant 0 : index
    %18 = vector.load %arg3[%17, %c0_5] : memref<8x32xf32, #tpu.memory_space<vmem>>, vector<1x32xf32>
    tpu.vector_store %arg3[%17, %c0_5], %16 {strides = array<i32>} : memref<8x32xf32, #tpu.memory_space<vmem>>, vector<1x32xf32>,
    %c2_i32 = arith.constant 2 : i32
    %19 = arith.addi %0, %c2_i32 : i32
    %20 = arith.index_cast %19 : i32 to index
    %21 = memref.load %arg1[%20] : memref<16xi32, #tpu.memory_space<smem>>
    %c0_i32_6 = arith.constant 0 : i32
    %c15_i32_7 = arith.constant 15 : i32
    %22 = arith.maxsi %c0_i32_6, %21 : i32
    %23 = arith.minsi %c15_i32_7, %22 : i32
    %24 = arith.index_cast %23 : i32 to index
    %c0_8 = arith.constant 0 : index
    %25 = vector.load %arg2[%24, %c0_8] : memref<16x32xf32, #tpu.memory_space<vmem>>, vector<1x32xf32>
    %26 = arith.index_cast %c2_i32 : i32 to index
    %c0_9 = arith.constant 0 : index
    %27 = vector.load %arg3[%26, %c0_9] : memref<8x32xf32, #tpu.memory_space<vmem>>, vector<1x32xf32>
    tpu.vector_store %arg3[%26, %c0_9], %25 {strides = array<i32>} : memref<8x32xf32, #tpu.memory_space<vmem>>, vector<1x32xf32>,
    %c3_i32 = arith.constant 3 : i32
    %28 = arith.addi %0, %c3_i32 : i32
    %29 = arith.index_cast %28 : i32 to index
    %30 = memref.load %arg1[%29] : memref<16xi32, #tpu.memory_space<smem>>
    %c0_i32_10 = arith.constant 0 : i32
    %c15_i32_11 = arith.constant 15 : i32
    %31 = arith.maxsi %c0_i32_10, %30 : i32
    %32 = arith.minsi %c15_i32_11, %31 : i32
    %33 = arith.index_cast %32 : i32 to index
    %c0_12 = arith.constant 0 : index
    %34 = vector.load %arg2[%33, %c0_12] : memref<16x32xf32, #tpu.memory_space<vmem>>, vector<1x32xf32>
    %35 = arith.index_cast %c3_i32 : i32 to index
    %c0_13 = arith.constant 0 : index
    %36 = vector.load %arg3[%35, %c0_13] : memref<8x32xf32, #tpu.memory_space<vmem>>, vector<1x32xf32>
    tpu.vector_store %arg3[%35, %c0_13], %34 {strides = array<i32>} : memref<8x32xf32, #tpu.memory_space<vmem>>, vector<1x32xf32>,
    %c4_i32 = arith.constant 4 : i32
    %37 = arith.addi %0, %c4_i32 : i32
    %38 = arith.index_cast %37 : i32 to index
    %39 = memref.load %arg1[%38] : memref<16xi32, #tpu.memory_space<smem>>
    %c0_i32_14 = arith.constant 0 : i32
    %c15_i32_15 = arith.constant 15 : i32
    %40 = arith.maxsi %c0_i32_14, %39 : i32
    %41 = arith.minsi %c15_i32_15, %40 : i32
    %42 = arith.index_cast %41 : i32 to index
    %c0_16 = arith.constant 0 : index
    %43 = vector.load %arg2[%42, %c0_16] : memref<16x32xf32, #tpu.memory_space<vmem>>, vector<1x32xf32>
    %44 = arith.index_cast %c4_i32 : i32 to index
    %c0_17 = arith.constant 0 : index
    %45 = vector.load %arg3[%44, %c0_17] : memref<8x32xf32, #tpu.memory_space<vmem>>, vector<1x32xf32>
    tpu.vector_store %arg3[%44, %c0_17], %43 {strides = array<i32>} : memref<8x32xf32, #tpu.memory_space<vmem>>, vector<1x32xf32>,
    %c5_i32 = arith.constant 5 : i32
    %46 = arith.addi %0, %c5_i32 : i32
    %47 = arith.index_cast %46 : i32 to index
    %48 = memref.load %arg1[%47] : memref<16xi32, #tpu.memory_space<smem>>
    %c0_i32_18 = arith.constant 0 : i32
    %c15_i32_19 = arith.constant 15 : i32
    %49 = arith.maxsi %c0_i32_18, %48 : i32
    %50 = arith.minsi %c15_i32_19, %49 : i32
    %51 = arith.index_cast %50 : i32 to index
    %c0_20 = arith.constant 0 : index
    %52 = vector.load %arg2[%51, %c0_20] : memref<16x32xf32, #tpu.memory_space<vmem>>, vector<1x32xf32>
    %53 = arith.index_cast %c5_i32 : i32 to index
    %c0_21 = arith.constant 0 : index
    %54 = vector.load %arg3[%53, %c0_21] : memref<8x32xf32, #tpu.memory_space<vmem>>, vector<1x32xf32>
    tpu.vector_store %arg3[%53, %c0_21], %52 {strides = array<i32>} : memref<8x32xf32, #tpu.memory_space<vmem>>, vector<1x32xf32>,
    %c6_i32 = arith.constant 6 : i32
    %55 = arith.addi %0, %c6_i32 : i32
    %56 = arith.index_cast %55 : i32 to index
    %57 = memref.load %arg1[%56] : memref<16xi32, #tpu.memory_space<smem>>
    %c0_i32_22 = arith.constant 0 : i32
    %c15_i32_23 = arith.constant 15 : i32
    %58 = arith.maxsi %c0_i32_22, %57 : i32
    %59 = arith.minsi %c15_i32_23, %58 : i32
    %60 = arith.index_cast %59 : i32 to index
    %c0_24 = arith.constant 0 : index
    %61 = vector.load %arg2[%60, %c0_24] : memref<16x32xf32, #tpu.memory_space<vmem>>, vector<1x32xf32>
    %62 = arith.index_cast %c6_i32 : i32 to index
    %c0_25 = arith.constant 0 : index
    %63 = vector.load %arg3[%62, %c0_25] : memref<8x32xf32, #tpu.memory_space<vmem>>, vector<1x32xf32>
    tpu.vector_store %arg3[%62, %c0_25], %61 {strides = array<i32>} : memref<8x32xf32, #tpu.memory_space<vmem>>, vector<1x32xf32>,
    %c7_i32 = arith.constant 7 : i32
    %64 = arith.addi %0, %c7_i32 : i32
    %65 = arith.index_cast %64 : i32 to index
    %66 = memref.load %arg1[%65] : memref<16xi32, #tpu.memory_space<smem>>
    %c0_i32_26 = arith.constant 0 : i32
    %c15_i32_27 = arith.constant 15 : i32
    %67 = arith.maxsi %c0_i32_26, %66 : i32
    %68 = arith.minsi %c15_i32_27, %67 : i32
    %69 = arith.index_cast %68 : i32 to index
    %c0_28 = arith.constant 0 : index
    %70 = vector.load %arg2[%69, %c0_28] : memref<16x32xf32, #tpu.memory_space<vmem>>, vector<1x32xf32>
    %71 = arith.index_cast %c7_i32 : i32 to index
    %c0_29 = arith.constant 0 : index
    %72 = vector.load %arg3[%71, %c0_29] : memref<8x32xf32, #tpu.memory_space<vmem>>, vector<1x32xf32>
    tpu.vector_store %arg3[%71, %c0_29], %70 {strides = array<i32>} : memref<8x32xf32, #tpu.memory_space<vmem>>, vector<1x32xf32>,
    %c8_i32_30 = arith.constant 8 : i32
    return
  }
  func.func @transform_0(%arg0: i32, %arg1: memref<16xi32, #tpu.memory_space<smem>>) -> (i32, i32) {
    %c0_i32 = arith.constant 0 : i32
    %c0_i32_0 = arith.constant 0 : i32
    %c0_i32_1 = arith.constant 0 : i32
    return %c0_i32, %c0_i32_0 : i32, i32
  }
  func.func @transform_1(%arg0: i32, %arg1: memref<16xi32, #tpu.memory_space<smem>>) -> (i32, i32) {
    %c0_i32 = arith.constant 0 : i32
    %c0_i32_0 = arith.constant 0 : i32
    return %arg0, %c0_i32 : i32, i32
  }
}

</mosaic_0001>

<llo_original>
// kernel: tpu_custom_call.1
$region0: #{tpu_custom_call.1}
  #allocation0 [shape = 'u32[]', space=smem, size = 0x4, offset = 0x4, fixed_abs, tag = 'smem constant byte address 0x4 - core index']
  #allocation1 [shape = 'u32[144,128]{1,0:T(1,128)}', space=vmem, size = 0x12000, scoped, tag = 'internal scratch']
  #allocation2 [shape = 's32[1]{0}', space=sflag, size = 0x4, scoped, tag = 'scoped memory for tpu_custom_call.1']
  #allocation3 [shape = 'u8[512]{0}', space=smem, size = 0x200, scoped, tag = 'prefetched SMEM operand 0']
  %s0 = inlined_call_operand.hbm [shape: s32[16], index: 0, kind: input, shape index: {}]
  %s1 = inlined_call_operand.hbm [shape: f32[16,32], index: 1, kind: input, shape index: {}]
  %s2 = inlined_call_operand.hbm [shape: f32[16,32], index: 2, kind: output, shape index: {}]
  %s3 = sld [smem:[#allocation0]]
  $region41: #{tpu_custom_call.1} parent=0
    _
  %s5 = ssub.s32 1, %s3
  %s6 = scalar_select 0, %s5, %s3
  %8 = dma.hbm_to_smem %s0, 16, [#allocation3], [#allocation2]
  %9 = dma.done [#allocation2], 16
  %10 = sfence
  $region1: #{tpu_custom_call.1} parent=0
    #allocation4 [shape = 'u8[8192]{0}', space=vmem, size = 0x2000, scoped, tag = 'input window, operand 1, single buffered']
    #allocation5 [shape = 's32[2]{0}', space=sflag, size = 0x8, scoped, tag = 'scoped memory for tpu_custom_call.1']
    #allocation6 [shape = 's32[2]{0}', space=sflag, size = 0x8, scoped, tag = 'scoped memory for tpu_custom_call.1']
    #allocation7 [shape = 'u8[8192]{0}', space=vmem, size = 0x2000, scoped, tag = 'output window, operand 0']
    %11 = vsyncpa [#allocation5], 0
    %12 = vsyncpa [#allocation6], 0
    %s13 = scalar_lea.sflag [#allocation6], 1
    %14 = vsyncpa %s13, 0
    loop: start=0, step=1, limit=4
    $region2: #{tpu_custom_call.1} parent=1 // loop_pre_header
      _
    $region3: #{tpu_custom_call.1} parent=1 // loop_header
      %s16 = sphi 0, %s20
      %p17 = scmp.ge.s32.totalorder %s16, 4
      %s24 = sphi 0, %s24
      %s26 = sphi 0, %s24
      %s27 = sphi 0, %s26
      %s41 = sphi 0, %s27
      %s47 = sphi 0, %s49
      %s50 = sphi 0, %s47
      %s51 = sphi 0, %s50
      %s67 = sphi 0, %s51
    $region4: #{tpu_custom_call.1} parent=1 // loop_header_branch
      %19 = sbr.rel (%p17) target = $region8
    $region5: #{tpu_custom_call.1} parent=1 // loop_body
      %s21 = ssub.s32 %s16, 1
      %s22 = ssub.s32 %s16, 2
      %s23 = sadd.s32 %s16, 1
      %s25 = sadd.s32 %s24, 1
      %p28 = scmp.eq.s32.totalorder %s16, 1
      %p29 = scmp.ne.s32.totalorder %s24, %s26
      %p30 = scmp.eq.s32.totalorder %s16, 0
      %p31 = por %p29, %p30
      %p32 = scmp.ne.s32.totalorder %s24, %s26
      %p33 = scmp.eq.s32.totalorder %s21, 1
      %p34 = por %p32, %p33
      %p35 = scmp.ne.s32.totalorder %s26, %s27
      %p36 = scmp.eq.s32.totalorder %s21, 0
      %p37 = por %p35, %p36
      %p38 = scmp.ne.s32.totalorder %s26, %s27
      %p39 = scmp.eq.s32.totalorder %s22, 1
      %p40 = por %p38, %p39
      %p42 = scmp.ne.s32.totalorder %s27, %s41
      %p43 = scmp.eq.s32.totalorder %s22, 0
      %p44 = por %p42, %p43
      %s45 = ssub.s32 %s16, %s23
      %p46 = scmp.eq.s32.totalorder %s45, 0
      %s48 = sadd.s32 %s47, 1
      %s49 = scalar_select %p46, %s47, %s48
      %p52 = pneg %p46
      %p53 = scmp.eq.s32.totalorder %s16, 1
      %p54 = por %p52, %p53
      %p55 = scmp.ne.s32.totalorder %s47, %s50
      %p56 = scmp.eq.s32.totalorder %s16, 0
      %p57 = por %p55, %p56
      %p58 = scmp.ne.s32.totalorder %s47, %s50
      %p59 = scmp.eq.s32.totalorder %s21, 1
      %p60 = por %p58, %p59
      %p61 = scmp.ne.s32.totalorder %s50, %s51
      %p62 = scmp.eq.s32.totalorder %s21, 0
      %p63 = por %p61, %p62
      %p64 = scmp.ne.s32.totalorder %s50, %s51
      %p65 = scmp.eq.s32.totalorder %s22, 1
      %p66 = por %p64, %p65
      %p68 = scmp.ne.s32.totalorder %s51, %s67
      %p69 = scmp.eq.s32.totalorder %s22, 0
      %p70 = por %p68, %p69
      %p71 = scmp.le.s32.totalorder 1, %s16
      %p72 = scmp.lt.s32.totalorder %s16, 3
      %p73 = pnand %p71, %p72
      %p74 = pneg %p73
      // Predicated region
      $region9: #{tpu_custom_call.1} parent=5 // pred_check
        _
      $region10: #{tpu_custom_call.1} parent=5 // pred_check_branch
        %76 = sbr.rel (%p73) target = $region12
      $region11: #{tpu_custom_call.1} parent=5 // pred_region
        %s77 = ssub.s32 %s16, 1
        // Predicated region
        $region13: #{tpu_custom_call.1} parent=11 // pred_check
          %p78 = pneg %p37
        $region14: #{tpu_custom_call.1} parent=11 // pred_check_branch
          %80 = sbr.rel (%p78) target = $region16
        $region15: #{tpu_custom_call.1} parent=11 // pred_region
          %s82 = ssub.s32 256, 256
          %83 = vsyncadd [#allocation5], %s82
          %s84 = sshll.u32 [#allocation4], 4
          %s85 = int_to_ptr.vmem [resolvable:$true] %s84
          %90 = dma.hbm_to_vmem [thread:$0]  %s1, 256, %s85, [#allocation5], 128, 128, 8
        $region16: #{tpu_custom_call.1} parent=11 // pred_fallthru
          _
      $region12: #{tpu_custom_call.1} parent=5 // pred_fallthru
        _
      %p91 = scmp.lt.s32.totalorder %s16, 2
      // Predicated region
      $region17: #{tpu_custom_call.1} parent=5 // pred_check
        %p92 = pneg %p91
      $region18: #{tpu_custom_call.1} parent=5 // pred_check_branch
        %94 = sbr.rel (%p92) target = $region20
      $region19: #{tpu_custom_call.1} parent=5 // pred_region
        _
      $region20: #{tpu_custom_call.1} parent=5 // pred_fallthru
        _
      %p95 = scmp.le.s32.totalorder 1, %s16
      %p96 = scmp.lt.s32.totalorder %s16, 3
      %p97 = pnand %p95, %p96
      %p98 = pneg %p97
      // Predicated region
      $region21: #{tpu_custom_call.1} parent=5 // pred_check
        _
      $region22: #{tpu_custom_call.1} parent=5 // pred_check_branch
        %100 = sbr.rel (%p97) target = $region24
      $region23: #{tpu_custom_call.1} parent=5 // pred_region
        %s101 = ssub.s32 %s16, 1
        // Predicated region
        $region25: #{tpu_custom_call.1} parent=23 // pred_check
          %p102 = pneg %p37
        $region26: #{tpu_custom_call.1} parent=23 // pred_check_branch
          %104 = sbr.rel (%p102) target = $region28
        $region27: #{tpu_custom_call.1} parent=23 // pred_region
          %105 = dma.done [#allocation5], 256
        $region28: #{tpu_custom_call.1} parent=23 // pred_fallthru
          _
        %p106 = pneg %p37
        %p107 = pneg %p34
        %p108 = pneg %p63
        %p109 = pneg %p60
        %s110 = sand.u32 %s50, 1
        %s111 = scalar_lea.sflag [#allocation6], %s110
        %s112 = sand.u32 %s50, 1
        %s113 = smul.addr %s112, 8
        %s114 = scalar_lea.vmem [#allocation7], %s113
        %s115 = smul.u32 %s21, 8
        %s116 = sld [smem:[#allocation3 + %s115]]
        %p117 = scmp.gt.s32.totalorder %s116, 0
        %s118 = scalar_select %p117, %s116, 0
        %p119 = scmp.lt.s32.totalorder %s118, 15
        %s120 = scalar_select %p119, %s118, 15
        %s121 = scalar_lea.vmem [#allocation4], %s120
        %v122 = vld [vmem:[%s121] sm:$0x1]
        %vm123 = vcmask 253952
        %124 = vst.msk [vmem:[%s114] sm:$0x1] %vm123, %v122
        %s125 = sadd.s32 %s115, 1
        %s126 = sld [smem:[#allocation3 + %s125]]
        %p127 = scmp.gt.s32.totalorder %s126, 0
        %s128 = scalar_select %p127, %s126, 0
        %p129 = scmp.lt.s32.totalorder %s128, 15
        %s130 = scalar_select %p129, %s128, 15
        %s131 = scalar_lea.vmem [#allocation4], %s130
        %v132 = vld [vmem:[%s131] sm:$0x1]
        %133 = vst.msk [vmem:[%s114 + $0x1] sm:$0x1] %vm123, %v132
        %s134 = sadd.s32 %s115, 2
        %s135 = sld [smem:[#allocation3 + %s134]]
        %p136 = scmp.gt.s32.totalorder %s135, 0
        %s137 = scalar_select %p136, %s135, 0
        %p138 = scmp.lt.s32.totalorder %s137, 15
        %s139 = scalar_select %p138, %s137, 15
        %s140 = scalar_lea.vmem [#allocation4], %s139
        %v141 = vld [vmem:[%s140] sm:$0x1]
        %142 = vst.msk [vmem:[%s114 + $0x2] sm:$0x1] %vm123, %v141
        %s143 = sadd.s32 %s115, 3
        %s144 = sld [smem:[#allocation3 + %s143]]
        %p145 = scmp.gt.s32.totalorder %s144, 0
        %s146 = scalar_select %p145, %s144, 0
        %p147 = scmp.lt.s32.totalorder %s146, 15
        %s148 = scalar_select %p147, %s146, 15
        %s149 = scalar_lea.vmem [#allocation4], %s148
        %v150 = vld [vmem:[%s149] sm:$0x1]
        %151 = vst.msk [vmem:[%s114 + $0x3] sm:$0x1] %vm123, %v150
        %s152 = sadd.s32 %s115, 4
        %s153 = sld [smem:[#allocation3 + %s152]]
        %p154 = scmp.gt.s32.totalorder %s153, 0
        %s155 = scalar_select %p154, %s153, 0
        %p156 = scmp.lt.s32.totalorder %s155, 15
        %s157 = scalar_select %p156, %s155, 15
        %s158 = scalar_lea.vmem [#allocation4], %s157
        %v159 = vld [vmem:[%s158] sm:$0x1]
        %160 = vst.msk [vmem:[%s114 + $0x4] sm:$0x1] %vm123, %v159
        %s161 = sadd.s32 %s115, 5
        %s162 = sld [smem:[#allocation3 + %s161]]
        %p163 = scmp.gt.s32.totalorder %s162, 0
        %s164 = scalar_select %p163, %s162, 0
        %p165 = scmp.lt.s32.totalorder %s164, 15
        %s166 = scalar_select %p165, %s164, 15
        %s167 = scalar_lea.vmem [#allocation4], %s166
        %v168 = vld [vmem:[%s167] sm:$0x1]
        %169 = vst.msk [vmem:[%s114 + $0x5] sm:$0x1] %vm123, %v168
        %s170 = sadd.s32 %s115, 6
        %s171 = sld [smem:[#allocation3 + %s170]]
        %p172 = scmp.gt.s32.totalorder %s171, 0
        %s173 = scalar_select %p172, %s171, 0
        %p174 = scmp.lt.s32.totalorder %s173, 15
        %s175 = scalar_select %p174, %s173, 15
        %s176 = scalar_lea.vmem [#allocation4], %s175
        %v177 = vld [vmem:[%s176] sm:$0x1]
        %178 = vst.msk [vmem:[%s114 + $0x6] sm:$0x1] %vm123, %v177
        %s179 = sadd.s32 %s115, 7
        %s180 = sld [smem:[#allocation3 + %s179]]
        %p181 = scmp.gt.s32.totalorder %s180, 0
        %s182 = scalar_select %p181, %s180, 0
        %p183 = scmp.lt.s32.totalorder %s182, 15
        %s184 = scalar_select %p183, %s182, 15
        %s185 = scalar_lea.vmem [#allocation4], %s184
        %v186 = vld [vmem:[%s185] sm:$0x1]
        %187 = vst.msk [vmem:[%s114 + $0x7] sm:$0x1] %vm123, %v186
        %s188 = sand.u32 %s50, 1
        %s189 = scalar_lea.sflag [#allocation6], %s188
        %s190 = sand.u32 %s50, 1
        %s191 = smul.addr %s190, 8
        %s192 = scalar_lea.vmem [#allocation7], %s191
        // Predicated region
        $region29: #{tpu_custom_call.1} parent=23 // pred_check
          %p193 = pneg %p60
        $region30: #{tpu_custom_call.1} parent=23 // pred_check_branch
          %195 = sbr.rel (%p193) target = $region32
        $region31: #{tpu_custom_call.1} parent=23 // pred_region
          %s197 = ssub.s32 128, 128
          %198 = vsyncadd %s189, %s197
          %s199 = smul.addr %s21, 128
          %s200 = scalar_lea.hbm %s2, %s199
          %s202 = sshll.u32 %s192, 4
          %s203 = int_to_ptr.vmem [resolvable:$true] %s202
          %205 = dma.vmem_to_hbm [thread:$0]  %s203, 128, %s200, %s189
        $region32: #{tpu_custom_call.1} parent=23 // pred_fallthru
          _
      $region24: #{tpu_custom_call.1} parent=5 // pred_fallthru
        _
      %p206 = scmp.le.s32.totalorder 2, %s16
      // Predicated region
      $region33: #{tpu_custom_call.1} parent=5 // pred_check
        %p207 = pneg %p206
      $region34: #{tpu_custom_call.1} parent=5 // pred_check_branch
        %209 = sbr.rel (%p207) target = $region36
      $region35: #{tpu_custom_call.1} parent=5 // pred_region
        %s210 = ssub.s32 %s16, 2
        // Predicated region
        $region37: #{tpu_custom_call.1} parent=35 // pred_check
          %p211 = pneg %p66
        $region38: #{tpu_custom_call.1} parent=35 // pred_check_branch
          %213 = sbr.rel (%p211) target = $region40
        $region39: #{tpu_custom_call.1} parent=35 // pred_region
          %s214 = sand.u32 %s51, 1
          %s215 = scalar_lea.sflag [#allocation6], %s214
          %s216 = sand.u32 %s51, 1
          %s217 = smul.addr %s216, 8
          %s218 = scalar_lea.vmem [#allocation7], %s217
          %219 = dma.done %s215, 128
        $region40: #{tpu_custom_call.1} parent=35 // pred_fallthru
          _
      $region36: #{tpu_custom_call.1} parent=5 // pred_fallthru
        _
    $region6: #{tpu_custom_call.1} parent=1 // loop_footer
      %s20 = sadd.s32 1, %s16
    $region7: #{tpu_custom_call.1} parent=1 // loop_footer_branch
      %15 = sbr.rel target = $region3
    $region8: #{tpu_custom_call.1} parent=1 // loop_exit
      _
    %220 = vsyncpa [#allocation5], 1
    %s221 = scalar_lea.sflag [#allocation5], 1
    %222 = vsyncpa %s221, 1
    %223 = vsyncpa [#allocation6], 1
    %s224 = scalar_lea.sflag [#allocation6], 1
    %225 = vsyncpa %s224, 1

</llo_original>
